<compile_context>
chip_gen: v6e
topology: v6e:2x2x1
jax: 0.10.0
libtpu: 0.0.40
codegen_flags: <defaults>
</compile_context>

<pallas_src>
import functools

import jax
import jax.numpy as jnp
import numpy as np
from jax.experimental import pallas as pl
from jax.experimental.pallas import tpu as pltpu


def _round_up(v, m):
    return ((v + m - 1) // m) * m


def _resize_conv_kernel(x_ref, w_ref, b_ref, o_ref, *, ksize, wp, l_out):
    """One batch element.

    x_ref: (1, Cin, L_in)     upsampled+padded image, pixels flattened row-major (stride Wp) in lanes
    w_ref: (Cout, KH*KW*Cin)  flattened conv weights, row order = tap-major then Cin
    b_ref: (Cout, 1)
    o_ref: (1, Cout, L_out)   out[0, o, r*Wp + q] = conv evaluated at padded position (r, q)
    """
    x = x_ref[0]                                    # (Cin, L_in)
    cin = x.shape[0]

    # im2col: each tap (kh, kw) is a static lane-offset slice of the flat image — no per-tap
    # tile-crossing reshapes of pixel data and no strided sublane slicing.
    pieces = []
    for kh in range(ksize):
        for kw in range(ksize):
            d = kh * wp + kw
            pieces.append(x[:, d:d + l_out])        # (Cin, L_out)
    patches = jnp.stack(pieces, axis=0)             # (KH*KW, Cin, L_out) — leading-dim stack (cheap)
    patches = patches.reshape(ksize * ksize * cin, l_out)   # lane dim untouched

    # Single MXU matmul, K = KH*KW*Cin, pixels in the lane dimension -> lane-dense (Cout, L_out).
    acc = jnp.dot(w_ref[...], patches, preferred_element_type=jnp.float32)
    acc = acc + b_ref[...]                          # bias broadcast over lanes
    o_ref[...] = acc[None].astype(o_ref.dtype)


def _reflect_upsample_index(size, scale, pad):
    """Source index into the ORIGINAL axis for each coordinate of the padded, upsampled axis."""
    up = size * scale
    p = np.arange(-pad, up + pad)
    p = np.where(p < 0, -p, p)                      # ReflectionPad2d (no edge repeat)
    p = np.where(p >= up, 2 * up - 2 - p, p)
    return (p // scale).astype(np.int32)            # nn.Upsample(mode='nearest') source index


def resize_conv_layer(x_nchw, weight_oihw, bias, *, kernel_size, stride, scale_factor=2):
    """Equivalent of ResizeConvLayer.forward for NCHW input; returns NCHW output."""
    n, cin, h, w = x_nchw.shape
    cout = weight_oihw.shape[0]
    pad = int(np.floor(kernel_size / 2))

    hp = h * scale_factor + 2 * pad                 # padded, upsampled height
    wp = w * scale_factor + 2 * pad                 # padded, upsampled width
    ho = (hp - kernel_size) // stride + 1
    wo = (wp - kernel_size) // stride + 1

    # Flat-pixel (lane) sizes, rounded to multiples of 128 for lane-dense vregs and unmasked stores.
    max_delta = (kernel_size - 1) * (wp + 1)
    l_out = _round_up(hp * wp, 128)
    l_in = _round_up(l_out + max_delta, 128)

    # Nearest upsample + reflection pad == one static gather, fused with the (Hp,Wp)->lane flatten.
    rmap = _reflect_upsample_index(h, scale_factor, pad)           # (Hp,)
    cmap = _reflect_upsample_index(w, scale_factor, pad)           # (Wp,)
    flat_map = (rmap[:, None] * w + cmap[None, :]).reshape(-1)     # (Hp*Wp,)
    flat_map = np.concatenate(
        [flat_map, np.zeros(l_in - flat_map.size, np.int32)]).astype(np.int32)
    x_flat = jnp.take(x_nchw.reshape(n, cin, h * w),
                      jnp.asarray(flat_map), axis=2)               # (N, Cin, L_in)

    # (Cout, Cin, KH, KW) -> (Cout, KH*KW*Cin), matching the kernel's patch-row order (tap, Cin).
    kkc = kernel_size * kernel_size * cin
    w_flat = jnp.transpose(weight_oihw, (0, 2, 3, 1)).reshape(cout, kkc)
    b2 = bias.reshape(cout, 1)

    kernel = functools.partial(_resize_conv_kernel, ksize=kernel_size, wp=wp, l_out=l_out)

    out_flat = pl.pallas_call(
        kernel,
        out_shape=jax.ShapeDtypeStruct((n, cout, l_out), x_nchw.dtype),
        grid=(n,),
        in_specs=[
            pl.BlockSpec((1, cin, l_in), lambda b: (b, 0, 0)),
            pl.BlockSpec((cout, kkc), lambda b: (0, 0)),
            pl.BlockSpec((cout, 1), lambda b: (0, 0)),
        ],
        out_specs=pl.BlockSpec((1, cout, l_out), lambda b: (b, 0, 0)),
        compiler_params=pltpu.CompilerParams(dimension_semantics=("parallel",)),
    )(x_flat, w_flat, b2)

    # Lane-flat (N, Cout, L_out) -> NCHW (N, Cout, Ho, Wo): small slice + reshape, no transpose.
    y = out_flat[:, :, :hp * wp].reshape(n, cout, hp, wp)
    return y[:, :, 0:(ho - 1) * stride + 1:stride, 0:(wo - 1) * stride + 1:stride]


def _reference(x_nchw, weight_oihw, bias, *, kernel_size, stride, scale_factor=2):
    """Pure-JAX reference (upsample -> reflect pad -> conv) for correctness checking."""
    pad = int(np.floor(kernel_size / 2))
    up = jnp.repeat(jnp.repeat(x_nchw, scale_factor, axis=2), scale_factor, axis=3)
    padded = jnp.pad(up, ((0, 0), (0, 0), (pad, pad), (pad, pad)), mode="reflect")
    out = jax.lax.conv_general_dilated(
        padded, weight_oihw,
        window_strides=(stride, stride),
        padding="VALID",
        dimension_numbers=("NCHW", "OIHW", "NCHW"),
    )
    return out + bias.reshape(1, -1, 1, 1)


if __name__ == "__main__":
    # Module config: ResizeConvLayer(in_channels=4, out_channels=8, kernel_size=3, stride=1)
    in_channels, out_channels, kernel_size, stride, scale_factor = 4, 8, 3, 1, 2
    batch, height, width = 2, 16, 16

    key = jax.random.PRNGKey(0)
    kx, kw_, kb = jax.random.split(key, 3)

    x = jax.random.normal(kx, (batch, in_channels, height, width), dtype=jnp.float32)

    # Deterministic parameter init (uniform, like PyTorch's default conv init bounds).
    fan_in = in_channels * kernel_size * kernel_size
    bound = 1.0 / np.sqrt(fan_in)
    weight = jax.random.uniform(
        kw_, (out_channels, in_channels, kernel_size, kernel_size),
        minval=-bound, maxval=bound, dtype=jnp.float32)
    bias = jax.random.uniform(kb, (out_channels,), minval=-bound, maxval=bound,
                              dtype=jnp.float32)

    fwd = jax.jit(functools.partial(resize_conv_layer, kernel_size=kernel_size,
                                    stride=stride, scale_factor=scale_factor))
    out = jax.block_until_ready(fwd(x, weight, bias))

    ref = jax.block_until_ready(
        _reference(x, weight, bias, kernel_size=kernel_size, stride=stride,
                   scale_factor=scale_factor))

    assert out.shape == (batch, out_channels, height * scale_factor, width * scale_factor)
    np.testing.assert_allclose(np.asarray(out), np.asarray(ref), rtol=1e-5, atol=1e-5)

    print("KERNEL_OK")
</pallas_src>

<mosaic_0001>
module attributes {stable_mosaic.version = 11 : i64} {
  func.func @_resize_conv_kernel(%arg0: i32, %arg1: memref<1x4x1408xf32, #tpu.memory_space<vmem>>, %arg2: memref<8x36xf32, #tpu.memory_space<vmem>>, %arg3: memref<8x1xf32, #tpu.memory_space<vmem>>, %arg4: memref<1x8x1280xf32, #tpu.memory_space<vmem>>) attributes {dimension_semantics = [#tpu.dimension_semantics<parallel>], iteration_bounds = array<i64: 2>, scalar_prefetch = 0 : i64, scratch_operands = 0 : i64, tpu.core_type = #tpu.core_type<tc>, window_params = [{transform_indices = @transform_0, window_bounds = array<i64: 1, 4, 1408>}, {pipeline_mode = #tpu.pipeline_mode<synchronous>, transform_indices = @transform_1, window_bounds = array<i64: 8, 36>}, {pipeline_mode = #tpu.pipeline_mode<synchronous>, transform_indices = @transform_2, window_bounds = array<i64: 8, 1>}, {transform_indices = @transform_3, window_bounds = array<i64: 1, 8, 1280>}]} {
    %c0 = arith.constant 0 : index
    %c0_0 = arith.constant 0 : index
    %c0_1 = arith.constant 0 : index
    %0 = vector.load %arg1[%c0, %c0_0, %c0_1] : memref<1x4x1408xf32, #tpu.memory_space<vmem>>, vector<1x4x1408xf32>
    %1 = vector.shape_cast %0 : vector<1x4x1408xf32> to vector<4x1408xf32>
    %2 = vector.extract_strided_slice %1 {offsets = [0, 0], sizes = [4, 1280], strides = [1, 1]} : vector<4x1408xf32> to vector<4x1280xf32>
    %3 = vector.extract_strided_slice %1 {offsets = [0, 1], sizes = [4, 1280], strides = [1, 1]} : vector<4x1408xf32> to vector<4x1280xf32>
    %4 = vector.extract_strided_slice %1 {offsets = [0, 2], sizes = [4, 1280], strides = [1, 1]} : vector<4x1408xf32> to vector<4x1280xf32>
    %5 = vector.extract_strided_slice %1 {offsets = [0, 34], sizes = [4, 1280], strides = [1, 1]} : vector<4x1408xf32> to vector<4x1280xf32>
    %6 = vector.extract_strided_slice %1 {offsets = [0, 35], sizes = [4, 1280], strides = [1, 1]} : vector<4x1408xf32> to vector<4x1280xf32>
    %7 = vector.extract_strided_slice %1 {offsets = [0, 36], sizes = [4, 1280], strides = [1, 1]} : vector<4x1408xf32> to vector<4x1280xf32>
    %8 = vector.extract_strided_slice %1 {offsets = [0, 68], sizes = [4, 1280], strides = [1, 1]} : vector<4x1408xf32> to vector<4x1280xf32>
    %9 = vector.extract_strided_slice %1 {offsets = [0, 69], sizes = [4, 1280], strides = [1, 1]} : vector<4x1408xf32> to vector<4x1280xf32>
    %10 = vector.extract_strided_slice %1 {offsets = [0, 70], sizes = [4, 1280], strides = [1, 1]} : vector<4x1408xf32> to vector<4x1280xf32>
    %11 = vector.shape_cast %2 : vector<4x1280xf32> to vector<1x4x1280xf32>
    %12 = vector.shape_cast %3 : vector<4x1280xf32> to vector<1x4x1280xf32>
    %13 = vector.shape_cast %4 : vector<4x1280xf32> to vector<1x4x1280xf32>
    %14 = vector.shape_cast %5 : vector<4x1280xf32> to vector<1x4x1280xf32>
    %15 = vector.shape_cast %6 : vector<4x1280xf32> to vector<1x4x1280xf32>
    %16 = vector.shape_cast %7 : vector<4x1280xf32> to vector<1x4x1280xf32>
    %17 = vector.shape_cast %8 : vector<4x1280xf32> to vector<1x4x1280xf32>
    %18 = vector.shape_cast %9 : vector<4x1280xf32> to vector<1x4x1280xf32>
    %19 = vector.shape_cast %10 : vector<4x1280xf32> to vector<1x4x1280xf32>
    %20 = tpu.concatenate %11, %12, %13, %14, %15, %16, %17, %18, %19 in 0 : vector<1x4x1280xf32>, vector<1x4x1280xf32>, vector<1x4x1280xf32>, vector<1x4x1280xf32>, vector<1x4x1280xf32>, vector<1x4x1280xf32>, vector<1x4x1280xf32>, vector<1x4x1280xf32>, vector<1x4x1280xf32> -> vector<9x4x1280xf32>
    %21 = vector.shape_cast %20 : vector<9x4x1280xf32> to vector<36x1280xf32>
    %c0_2 = arith.constant 0 : index
    %c0_3 = arith.constant 0 : index
    %22 = vector.load %arg2[%c0_2, %c0_3] : memref<8x36xf32, #tpu.memory_space<vmem>>, vector<8x36xf32>
    %cst = arith.constant dense<0.000000e+00> : vector<8x1280xf32>
    %23 = tpu.matmul %22, %21, %cst {dimension_numbers = #tpu.dot_dimension_numbers<[1], [0], [0], [1], [0, 0, 1, 1], [], []>} : vector<8x36xf32>, vector<36x1280xf32>, vector<8x1280xf32> -> vector<8x1280xf32>
    %c0_4 = arith.constant 0 : index
    %c0_5 = arith.constant 0 : index
    %24 = vector.load %arg3[%c0_4, %c0_5] : memref<8x1xf32, #tpu.memory_space<vmem>>, vector<8x1xf32>
    %25 = vector.broadcast %24 : vector<8x1xf32> to vector<8x1280xf32>
    %26 = arith.addf %23, %25 : vector<8x1280xf32>
    %27 = vector.shape_cast %26 : vector<8x1280xf32> to vector<1x8x1280xf32>
    %c0_6 = arith.constant 0 : index
    %c0_7 = arith.constant 0 : index
    %c0_8 = arith.constant 0 : index
    %28 = vector.load %arg4[%c0_6, %c0_7, %c0_8] : memref<1x8x1280xf32, #tpu.memory_space<vmem>>, vector<1x8x1280xf32>
    tpu.vector_store %arg4[%c0_6, %c0_7, %c0_8], %27 {strides = array<i32>} : memref<1x8x1280xf32, #tpu.memory_space<vmem>>, vector<1x8x1280xf32>,
    return
  }
  func.func @transform_0(%arg0: i32) -> (i32, i32, i32) {
    %c0_i32 = arith.constant 0 : i32
    %c0_i32_0 = arith.constant 0 : i32
    %c0_i32_1 = arith.constant 0 : i32
    return %arg0, %c0_i32, %c0_i32_0 : i32, i32, i32
  }
  func.func @transform_1(%arg0: i32) -> (i32, i32) {
    %c0_i32 = arith.constant 0 : i32
    %c0_i32_0 = arith.constant 0 : i32
    %c0_i32_1 = arith.constant 0 : i32
    return %c0_i32, %c0_i32_0 : i32, i32
  }
  func.func @transform_2(%arg0: i32) -> (i32, i32) {
    %c0_i32 = arith.constant 0 : i32
    %c0_i32_0 = arith.constant 0 : i32
    %c0_i32_1 = arith.constant 0 : i32
    return %c0_i32, %c0_i32_0 : i32, i32
  }
  func.func @transform_3(%arg0: i32) -> (i32, i32, i32) {
    %c0_i32 = arith.constant 0 : i32
    %c0_i32_0 = arith.constant 0 : i32
    %c0_i32_1 = arith.constant 0 : i32
    return %arg0, %c0_i32, %c0_i32_0 : i32, i32, i32
  }
}

</mosaic_0001>

<llo_original>
// kernel: resize_conv_layer.1
$region0: #{resize_conv_layer.1}
  #allocation0 [shape = 'u32[]', space=smem, size = 0x4, offset = 0x4, fixed_abs, tag = 'smem constant byte address 0x4 - core index']
  #allocation1 [shape = 'u32[144,128]{1,0:T(1,128)}', space=vmem, size = 0x12000, scoped, tag = 'internal scratch']
  %s0 = inlined_call_operand.vmem [shape: f32[2,4,1408], index: 0, kind: input, shape index: {}]
  %s1 = inlined_call_operand.vmem [shape: f32[8,36], index: 1, kind: input, shape index: {}]
  %s2 = inlined_call_operand.vmem [shape: f32[8,1], index: 2, kind: input, shape index: {}]
  %s3 = inlined_call_operand.vmem [shape: f32[2,8,1280], index: 3, kind: output, shape index: {}]
  %s4 = sld [smem:[#allocation0]]
  $region45: #{resize_conv_layer.1} parent=0
    _
  %s6 = ssub.s32 1, %s4
  %s7 = scalar_select 0, %s6, %s4
  loop: start=0, step=1, limit=4
  $region2: #{resize_conv_layer.1} parent=0 // loop_pre_header
    _
  $region3: #{resize_conv_layer.1} parent=0 // loop_header
    %s9 = sphi 0, %s13
    %p10 = scmp.ge.s32.totalorder %s9, 4
    %s19 = sphi 0, %s21
    %s22 = sphi 0, %s19
    %s23 = sphi 0, %s22
    %s39 = sphi 0, %s23
    %s43 = sphi 0, %s43
    %s45 = sphi 0, %s43
    %s46 = sphi 0, %s45
    %s60 = sphi 0, %s46
    %s64 = sphi 0, %s64
    %s66 = sphi 0, %s64
    %s67 = sphi 0, %s66
    %s81 = sphi 0, %s67
    %s87 = sphi 0, %s89
    %s90 = sphi 0, %s87
    %s91 = sphi 0, %s90
    %s107 = sphi 0, %s91
  $region4: #{resize_conv_layer.1} parent=0 // loop_header_branch
    %12 = sbr.rel (%p10) target = $region8
  $region5: #{resize_conv_layer.1} parent=0 // loop_body
    %s14 = ssub.s32 %s9, 1
    %s15 = ssub.s32 %s9, 2
    %s16 = sadd.s32 %s9, 1
    %s17 = ssub.s32 %s9, %s16
    %p18 = scmp.eq.s32.totalorder %s17, 0
    %s20 = sadd.s32 %s19, 1
    %s21 = scalar_select %p18, %s19, %s20
    %p24 = pneg %p18
    %p25 = scmp.eq.s32.totalorder %s9, 1
    %p26 = por %p24, %p25
    %p27 = scmp.ne.s32.totalorder %s19, %s22
    %p28 = scmp.eq.s32.totalorder %s9, 0
    %p29 = por %p27, %p28
    %p30 = scmp.ne.s32.totalorder %s19, %s22
    %p31 = scmp.eq.s32.totalorder %s14, 1
    %p32 = por %p30, %p31
    %p33 = scmp.ne.s32.totalorder %s22, %s23
    %p34 = scmp.eq.s32.totalorder %s14, 0
    %p35 = por %p33, %p34
    %p36 = scmp.ne.s32.totalorder %s22, %s23
    %p37 = scmp.eq.s32.totalorder %s15, 1
    %p38 = por %p36, %p37
    %p40 = scmp.ne.s32.totalorder %s23, %s39
    %p41 = scmp.eq.s32.totalorder %s15, 0
    %p42 = por %p40, %p41
    %s44 = sadd.s32 %s43, 1
    %p47 = scmp.eq.s32.totalorder %s9, 1
    %p48 = scmp.ne.s32.totalorder %s43, %s45
    %p49 = scmp.eq.s32.totalorder %s9, 0
    %p50 = por %p48, %p49
    %p51 = scmp.ne.s32.totalorder %s43, %s45
    %p52 = scmp.eq.s32.totalorder %s14, 1
    %p53 = por %p51, %p52
    %p54 = scmp.ne.s32.totalorder %s45, %s46
    %p55 = scmp.eq.s32.totalorder %s14, 0
    %p56 = por %p54, %p55
    %p57 = scmp.ne.s32.totalorder %s45, %s46
    %p58 = scmp.eq.s32.totalorder %s15, 1
    %p59 = por %p57, %p58
    %p61 = scmp.ne.s32.totalorder %s46, %s60
    %p62 = scmp.eq.s32.totalorder %s15, 0
    %p63 = por %p61, %p62
    %s65 = sadd.s32 %s64, 1
    %p68 = scmp.eq.s32.totalorder %s9, 1
    %p69 = scmp.ne.s32.totalorder %s64, %s66
    %p70 = scmp.eq.s32.totalorder %s9, 0
    %p71 = por %p69, %p70
    %p72 = scmp.ne.s32.totalorder %s64, %s66
    %p73 = scmp.eq.s32.totalorder %s14, 1
    %p74 = por %p72, %p73
    %p75 = scmp.ne.s32.totalorder %s66, %s67
    %p76 = scmp.eq.s32.totalorder %s14, 0
    %p77 = por %p75, %p76
    %p78 = scmp.ne.s32.totalorder %s66, %s67
    %p79 = scmp.eq.s32.totalorder %s15, 1
    %p80 = por %p78, %p79
    %p82 = scmp.ne.s32.totalorder %s67, %s81
    %p83 = scmp.eq.s32.totalorder %s15, 0
    %p84 = por %p82, %p83
    %s85 = ssub.s32 %s9, %s16
    %p86 = scmp.eq.s32.totalorder %s85, 0
    %s88 = sadd.s32 %s87, 1
    %s89 = scalar_select %p86, %s87, %s88
    %p92 = pneg %p86
    %p93 = scmp.eq.s32.totalorder %s9, 1
    %p94 = por %p92, %p93
    %p95 = scmp.ne.s32.totalorder %s87, %s90
    %p96 = scmp.eq.s32.totalorder %s9, 0
    %p97 = por %p95, %p96
    %p98 = scmp.ne.s32.totalorder %s87, %s90
    %p99 = scmp.eq.s32.totalorder %s14, 1
    %p100 = por %p98, %p99
    %p101 = scmp.ne.s32.totalorder %s90, %s91
    %p102 = scmp.eq.s32.totalorder %s14, 0
    %p103 = por %p101, %p102
    %p104 = scmp.ne.s32.totalorder %s90, %s91
    %p105 = scmp.eq.s32.totalorder %s15, 1
    %p106 = por %p104, %p105
    %p108 = scmp.ne.s32.totalorder %s91, %s107
    %p109 = scmp.eq.s32.totalorder %s15, 0
    %p110 = por %p108, %p109
    %p111 = scmp.le.s32.totalorder 1, %s9
    %p112 = scmp.lt.s32.totalorder %s9, 3
    %p113 = pnand %p111, %p112
    %p114 = pneg %p113
    // Predicated region
    $region9: #{resize_conv_layer.1} parent=5 // pred_check
      _
    $region10: #{resize_conv_layer.1} parent=5 // pred_check_branch
      %116 = sbr.rel (%p113) target = $region12
    $region11: #{resize_conv_layer.1} parent=5 // pred_region
      %s117 = ssub.s32 %s9, 1
      // Predicated region
      $region13: #{resize_conv_layer.1} parent=11 // pred_check
        %p118 = pneg %p56
      $region14: #{resize_conv_layer.1} parent=11 // pred_check_branch
        %120 = sbr.rel (%p118) target = $region16
      $region15: #{resize_conv_layer.1} parent=11 // pred_region
        _
      $region16: #{resize_conv_layer.1} parent=11 // pred_fallthru
        _
      // Predicated region
      $region17: #{resize_conv_layer.1} parent=11 // pred_check
        %p121 = pneg %p77
      $region18: #{resize_conv_layer.1} parent=11 // pred_check_branch
        %123 = sbr.rel (%p121) target = $region20
      $region19: #{resize_conv_layer.1} parent=11 // pred_region
        _
      $region20: #{resize_conv_layer.1} parent=11 // pred_fallthru
        _
    $region12: #{resize_conv_layer.1} parent=5 // pred_fallthru
      _
    %p124 = scmp.lt.s32.totalorder %s9, 2
    // Predicated region
    $region21: #{resize_conv_layer.1} parent=5 // pred_check
      %p125 = pneg %p124
    $region22: #{resize_conv_layer.1} parent=5 // pred_check_branch
      %127 = sbr.rel (%p125) target = $region24
    $region23: #{resize_conv_layer.1} parent=5 // pred_region
      // Predicated region
      $region25: #{resize_conv_layer.1} parent=23 // pred_check
        %p128 = pneg %p29
      $region26: #{resize_conv_layer.1} parent=23 // pred_check_branch
        %130 = sbr.rel (%p128) target = $region28
      $region27: #{resize_conv_layer.1} parent=23 // pred_region
        %p131 = scmp.lt.s32.totalorder %s9, 1
        %s132 = scalar_select %p131, %s9, 1
        %s133 = smul.addr %s132, 11
        %s134 = smul.addr %s133, 4
        %s135 = scalar_lea.vmem %s0, %s134
      $region28: #{resize_conv_layer.1} parent=23 // pred_fallthru
        _
    $region24: #{resize_conv_layer.1} parent=5 // pred_fallthru
      _
    %p136 = scmp.le.s32.totalorder 1, %s9
    %p137 = scmp.lt.s32.totalorder %s9, 3
    %p138 = pnand %p136, %p137
    %p139 = pneg %p138
    // Predicated region
    $region29: #{resize_conv_layer.1} parent=5 // pred_check
      _
    $region30: #{resize_conv_layer.1} parent=5 // pred_check_branch
      %141 = sbr.rel (%p138) target = $region32
    $region31: #{resize_conv_layer.1} parent=5 // pred_region
      %s142 = ssub.s32 %s9, 1
      %p143 = scmp.lt.s32.totalorder %s14, 1
      %s144 = scalar_select %p143, %s14, 1
      %s145 = smul.addr %s144, 11
      %s146 = smul.addr %s145, 4
      %s147 = scalar_lea.vmem %s0, %s146
      %p148 = pneg %p35
      %p149 = pneg %p32
      %p150 = pneg %p56
      %p151 = pneg %p53
      %p152 = pneg %p77
      %p153 = pneg %p74
      %p154 = pneg %p103
      %p155 = pneg %p100
      %p156 = scmp.lt.s32.totalorder %s14, 1
      %s157 = scalar_select %p156, %s14, 1
      %s158 = smul.addr %s157, 10
      %s159 = smul.addr %s158, 8
      %s160 = scalar_lea.vmem %s3, %s159
      %p161 = scmp.lt.s32.totalorder %s14, 1
      %s162 = scalar_select %p161, %s14, 1
      %s163 = smul.addr %s162, 11
      %s164 = smul.addr %s163, 4
      %s165 = scalar_lea.vmem %s0, %s164
      %p166 = scmp.lt.s32.totalorder %s14, 1
      %s167 = scalar_select %p166, %s14, 1
      %s168 = smul.addr %s167, 10
      %s169 = smul.addr %s168, 8
      %s170 = scalar_lea.vmem %s3, %s169
      %v171 = vld [vmem:[%s165] sm:$0xff]
      %v172 = vld [vmem:[%s165 + $0x8] sm:$0xff]
      %v173 = vld [vmem:[%s165 + $0x10] sm:$0xff]
      %v174 = vld [vmem:[%s165 + $0x18] sm:$0xff]
      %v175 = vld [vmem:[%s165 + $0x20] sm:$0xff]
      %v176 = vld [vmem:[%s165 + $0x28] sm:$0xf]
      %183 = vrot.lane.b32.xlu0 %v171, 127
      %v184 = vpop.permute.xlu0 %183
      %185 = vrot.lane.b32.xlu0 %v172, 127
      %v186 = vpop.permute.xlu0 %185
      %187 = vrot.lane.b32.xlu0 %v173, 127
      %v188 = vpop.permute.xlu0 %187
      %189 = vrot.lane.b32.xlu0 %v174, 127
      %v190 = vpop.permute.xlu0 %189
      %191 = vrot.lane.b32.xlu0 %v175, 127
      %v192 = vpop.permute.xlu0 %191
      %193 = vrot.lane.b32.xlu0 %v176, 127
      %v194 = vpop.permute.xlu0 %193
      %v195 = vrot.slane %v184, 4
      %v196 = vrot.slane %v186, 4
      %v197 = vrot.slane %v188, 4
      %v198 = vrot.slane %v190, 4
      %v199 = vrot.slane %v192, 4
      %v200 = vrot.slane %v194, 4
      %vm201 = vcmask 1043456
      %v202 = vsel %vm201, %v195, %v196
      %vm203 = vcmask 1039360
      %v204 = vsel %vm203, %v184, %v202
      %v205 = vsel %vm201, %v196, %v197
      %v206 = vsel %vm203, %v186, %v205
      %v207 = vsel %vm201, %v197, %v198
      %v208 = vsel %vm203, %v188, %v207
      %v209 = vsel %vm201, %v198, %v199
      %v210 = vsel %vm203, %v190, %v209
      %v211 = vsel %vm201, %v199, %v200
      %v212 = vsel %vm203, %v192, %v211
      %213 = vrot.lane.b32.xlu0 %v171, 126
      %v214 = vpop.permute.xlu0 %213
      %215 = vrot.lane.b32.xlu0 %v172, 126
      %v216 = vpop.permute.xlu0 %215
      %217 = vrot.lane.b32.xlu0 %v173, 126
      %v218 = vpop.permute.xlu0 %217
      %219 = vrot.lane.b32.xlu0 %v174, 126
      %v220 = vpop.permute.xlu0 %219
      %221 = vrot.lane.b32.xlu0 %v175, 126
      %v222 = vpop.permute.xlu0 %221
      %223 = vrot.lane.b32.xlu0 %v176, 126
      %v224 = vpop.permute.xlu0 %223
      %v225 = vrot.slane %v214, 4
      %v226 = vrot.slane %v216, 4
      %v227 = vrot.slane %v218, 4
      %v228 = vrot.slane %v220, 4
      %v229 = vrot.slane %v222, 4
      %v230 = vrot.slane %v224, 4
      %v231 = vsel %vm201, %v225, %v226
      %vm232 = vcmask 1031168
      %v233 = vsel %vm232, %v214, %v231
      %v234 = vsel %vm201, %v226, %v227
      %v235 = vsel %vm232, %v216, %v234
      %v236 = vsel %vm201, %v227, %v228
      %v237 = vsel %vm232, %v218, %v236
      %v238 = vsel %vm201, %v228, %v229
      %v239 = vsel %vm232, %v220, %v238
      %v240 = vsel %vm201, %v229, %v230
      %v241 = vsel %vm232, %v222, %v240
      %242 = vrot.lane.b32.xlu0 %v171, 94
      %v243 = vpop.permute.xlu0 %242
      %244 = vrot.lane.b32.xlu0 %v172, 94
      %v245 = vpop.permute.xlu0 %244
      %246 = vrot.lane.b32.xlu0 %v173, 94
      %v247 = vpop.permute.xlu0 %246
      %248 = vrot.lane.b32.xlu0 %v174, 94
      %v249 = vpop.permute.xlu0 %248
      %250 = vrot.lane.b32.xlu0 %v175, 94
      %v251 = vpop.permute.xlu0 %250
      %252 = vrot.lane.b32.xlu0 %v176, 94
      %v253 = vpop.permute.xlu0 %252
      %v254 = vrot.slane %v243, 4
      %v255 = vrot.slane %v245, 4
      %v256 = vrot.slane %v247, 4
      %v257 = vrot.slane %v249, 4
      %v258 = vrot.slane %v251, 4
      %v259 = vrot.slane %v253, 4
      %v260 = vsel %vm201, %v254, %v255
      %vm261 = vcmask 769024
      %v262 = vsel %vm261, %v243, %v260
      %v263 = vsel %vm201, %v255, %v256
      %v264 = vsel %vm261, %v245, %v263
      %v265 = vsel %vm201, %v256, %v257
      %v266 = vsel %vm261, %v247, %v265
      %v267 = vsel %vm201, %v257, %v258
      %v268 = vsel %vm261, %v249, %v267
      %v269 = vsel %vm201, %v258, %v259
      %v270 = vsel %vm261, %v251, %v269
      %271 = vrot.lane.b32.xlu0 %v171, 93
      %v272 = vpop.permute.xlu0 %271
      %273 = vrot.lane.b32.xlu0 %v172, 93
      %v274 = vpop.permute.xlu0 %273
      %275 = vrot.lane.b32.xlu0 %v173, 93
      %v276 = vpop.permute.xlu0 %275
      %277 = vrot.lane.b32.xlu0 %v174, 93
      %v278 = vpop.permute.xlu0 %277
      %279 = vrot.lane.b32.xlu0 %v175, 93
      %v280 = vpop.permute.xlu0 %279
      %281 = vrot.lane.b32.xlu0 %v176, 93
      %v282 = vpop.permute.xlu0 %281
      %v283 = vrot.slane %v272, 4
      %v284 = vrot.slane %v274, 4
      %v285 = vrot.slane %v276, 4
      %v286 = vrot.slane %v278, 4
      %v287 = vrot.slane %v280, 4
      %v288 = vrot.slane %v282, 4
      %v289 = vsel %vm201, %v283, %v284
      %vm290 = vcmask 760832
      %v291 = vsel %vm290, %v272, %v289
      %v292 = vsel %vm201, %v284, %v285
      %v293 = vsel %vm290, %v274, %v292
      %v294 = vsel %vm201, %v285, %v286
      %v295 = vsel %vm290, %v276, %v294
      %v296 = vsel %vm201, %v286, %v287
      %v297 = vsel %vm290, %v278, %v296
      %v298 = vsel %vm201, %v287, %v288
      %v299 = vsel %vm290, %v280, %v298
      %300 = vrot.lane.b32.xlu0 %v171, 92
      %v301 = vpop.permute.xlu0 %300
      %302 = vrot.lane.b32.xlu0 %v172, 92
      %v303 = vpop.permute.xlu0 %302
      %304 = vrot.lane.b32.xlu0 %v173, 92
      %v305 = vpop.permute.xlu0 %304
      %306 = vrot.lane.b32.xlu0 %v174, 92
      %v307 = vpop.permute.xlu0 %306
      %308 = vrot.lane.b32.xlu0 %v175, 92
      %v309 = vpop.permute.xlu0 %308
      %310 = vrot.lane.b32.xlu0 %v176, 92
      %v311 = vpop.permute.xlu0 %310
      %v312 = vrot.slane %v301, 4
      %v313 = vrot.slane %v303, 4
      %v314 = vrot.slane %v305, 4
      %v315 = vrot.slane %v307, 4
      %v316 = vrot.slane %v309, 4
      %v317 = vrot.slane %v311, 4
      %v318 = vsel %vm201, %v312, %v313
      %vm319 = vcmask 752640
      %v320 = vsel %vm319, %v301, %v318
      %v321 = vsel %vm201, %v313, %v314
      %v322 = vsel %vm319, %v303, %v321
      %v323 = vsel %vm201, %v314, %v315
      %v324 = vsel %vm319, %v305, %v323
      %v325 = vsel %vm201, %v315, %v316
      %v326 = vsel %vm319, %v307, %v325
      %v327 = vsel %vm201, %v316, %v317
      %v328 = vsel %vm319, %v309, %v327
      %329 = vrot.lane.b32.xlu0 %v171, 60
      %v330 = vpop.permute.xlu0 %329
      %331 = vrot.lane.b32.xlu0 %v172, 60
      %v332 = vpop.permute.xlu0 %331
      %333 = vrot.lane.b32.xlu0 %v173, 60
      %v334 = vpop.permute.xlu0 %333
      %335 = vrot.lane.b32.xlu0 %v174, 60
      %v336 = vpop.permute.xlu0 %335
      %337 = vrot.lane.b32.xlu0 %v175, 60
      %v338 = vpop.permute.xlu0 %337
      %339 = vrot.lane.b32.xlu0 %v176, 60
      %v340 = vpop.permute.xlu0 %339
      %v341 = vrot.slane %v330, 4
      %v342 = vrot.slane %v332, 4
      %v343 = vrot.slane %v334, 4
      %v344 = vrot.slane %v336, 4
      %v345 = vrot.slane %v338, 4
      %v346 = vrot.slane %v340, 4
      %v347 = vsel %vm201, %v341, %v342
      %vm348 = vcmask 490496
      %v349 = vsel %vm348, %v330, %v347
      %v350 = vsel %vm201, %v342, %v343
      %v351 = vsel %vm348, %v332, %v350
      %v352 = vsel %vm201, %v343, %v344
      %v353 = vsel %vm348, %v334, %v352
      %v354 = vsel %vm201, %v344, %v345
      %v355 = vsel %vm348, %v336, %v354
      %v356 = vsel %vm201, %v345, %v346
      %v357 = vsel %vm348, %v338, %v356
      %358 = vrot.lane.b32.xlu0 %v171, 59
      %v359 = vpop.permute.xlu0 %358
      %360 = vrot.lane.b32.xlu0 %v172, 59
      %v361 = vpop.permute.xlu0 %360
      %362 = vrot.lane.b32.xlu0 %v173, 59
      %v363 = vpop.permute.xlu0 %362
      %364 = vrot.lane.b32.xlu0 %v174, 59
      %v365 = vpop.permute.xlu0 %364
      %366 = vrot.lane.b32.xlu0 %v175, 59
      %v367 = vpop.permute.xlu0 %366
      %368 = vrot.lane.b32.xlu0 %v176, 59
      %v369 = vpop.permute.xlu0 %368
      %v370 = vrot.slane %v359, 4
      %v371 = vrot.slane %v361, 4
      %v372 = vrot.slane %v363, 4
      %v373 = vrot.slane %v365, 4
      %v374 = vrot.slane %v367, 4
      %v375 = vrot.slane %v369, 4
      %v376 = vsel %vm201, %v370, %v371
      %vm377 = vcmask 482304
      %v378 = vsel %vm377, %v359, %v376
      %v379 = vsel %vm201, %v371, %v372
      %v380 = vsel %vm377, %v361, %v379
      %v381 = vsel %vm201, %v372, %v373
      %v382 = vsel %vm377, %v363, %v381
      %v383 = vsel %vm201, %v373, %v374
      %v384 = vsel %vm377, %v365, %v383
      %v385 = vsel %vm201, %v374, %v375
      %v386 = vsel %vm377, %v367, %v385
      %387 = vrot.lane.b32.xlu0 %v171, 58
      %v388 = vpop.permute.xlu0 %387
      %389 = vrot.lane.b32.xlu0 %v172, 58
      %v390 = vpop.permute.xlu0 %389
      %391 = vrot.lane.b32.xlu0 %v173, 58
      %v392 = vpop.permute.xlu0 %391
      %393 = vrot.lane.b32.xlu0 %v174, 58
      %v394 = vpop.permute.xlu0 %393
      %395 = vrot.lane.b32.xlu0 %v175, 58
      %v396 = vpop.permute.xlu0 %395
      %397 = vrot.lane.b32.xlu0 %v176, 58
      %v398 = vpop.permute.xlu0 %397
      %v399 = vrot.slane %v388, 4
      %v400 = vrot.slane %v390, 4
      %v401 = vrot.slane %v392, 4
      %v402 = vrot.slane %v394, 4
      %v403 = vrot.slane %v396, 4
      %v404 = vrot.slane %v398, 4
      %v405 = vsel %vm201, %v399, %v400
      %vm406 = vcmask 474112
      %v407 = vsel %vm406, %v388, %v405
      %v408 = vsel %vm201, %v400, %v401
      %v409 = vsel %vm406, %v390, %v408
      %v410 = vsel %vm201, %v401, %v402
      %v411 = vsel %vm406, %v392, %v410
      %v412 = vsel %vm201, %v402, %v403
      %v413 = vsel %vm406, %v394, %v412
      %v414 = vsel %vm201, %v403, %v404
      %v415 = vsel %vm406, %v396, %v414
      %v416 = vld [vmem:[%s1] sm:$0xff]
      %v417 = vld [vmem:[%s2] sm:$0xff]
      %419 = vset.pattern.permute.xlu0 0
      %420 = vperm.xlu0 %419, %v417
      %v421 = vpop.permute.xlu0 %420
      %v423 = vcombine.low %v171, %v204
      %v424 = vcombine.high %v171, %v204
      %v425 = vcombine.low %v172, %v206
      %v426 = vcombine.high %v172, %v206
      %v427 = vcombine.low %v173, %v208
      %v428 = vcombine.high %v173, %v208
      %v429 = vcombine.low %v174, %v210
      %v430 = vcombine.high %v174, %v210
      %v431 = vcombine.low %v175, %v212
      %v432 = vcombine.high %v175, %v212
      %v433 = vcombine.low %v233, %v262
      %v434 = vcombine.high %v233, %v262
      %v435 = vcombine.low %v235, %v264
      %v436 = vcombine.high %v235, %v264
      %v437 = vcombine.low %v237, %v266
      %v438 = vcombine.high %v237, %v266
      %v439 = vcombine.low %v239, %v268
      %v440 = vcombine.high %v239, %v268
      %v441 = vcombine.low %v241, %v270
      %v442 = vcombine.high %v241, %v270
      %v443 = vcombine.low %v291, %v320
      %v444 = vcombine.high %v291, %v320
      %v445 = vcombine.low %v293, %v322
      %v446 = vcombine.high %v293, %v322
      %v447 = vcombine.low %v295, %v324
      %v448 = vcombine.high %v295, %v324
      %v449 = vcombine.low %v297, %v326
      %v450 = vcombine.high %v297, %v326
      %v451 = vcombine.low %v299, %v328
      %v452 = vcombine.high %v299, %v328
      %v453 = vcombine.low %v349, %v378
      %v454 = vcombine.high %v349, %v378
      %v455 = vcombine.low %v351, %v380
      %v456 = vcombine.high %v351, %v380
      %v457 = vcombine.low %v353, %v382
      %v458 = vcombine.high %v353, %v382
      %v459 = vcombine.low %v355, %v384
      %v460 = vcombine.high %v355, %v384
      %v461 = vcombine.low %v357, %v386
      %v462 = vcombine.high %v357, %v386
      %v463 = vcombine.high %v407, %v407
      %v464 = vcombine.high %v409, %v409
      %v465 = vcombine.high %v411, %v411
      %v466 = vcombine.high %v413, %v413
      %v467 = vcombine.high %v415, %v415
      %vm508 = vcmask 293888
      %v510 = vsel %vm508, %v416, 0
      %v512 = vsel %vm201, %v407, 0
      %v514 = vsel %vm201, %v463, 0
      %v516 = vsel %vm201, %v409, 0
      %v518 = vsel %vm201, %v464, 0
      %v520 = vsel %vm201, %v411, 0
      %v522 = vsel %vm201, %v465, 0
      %v524 = vsel %vm201, %v413, 0
      %v526 = vsel %vm201, %v466, 0
      %v528 = vsel %vm201, %v415, 0
      %v530 = vsel %vm201, %v467, 0
      %532 = vmatprep.subr.mxu0 0.0
      %533 = vmatpush1.msra.mxu0 0.0
      %534 = vmatprep.subr.mxu0 0.0
      %535 = vmatpush1.msra.mxu0 0.0
      %536 = vmatprep.subr.mxu0 0.0
      %537 = vmatpush1.msra.mxu0 0.0
      %538 = vmatprep.subr.mxu0 0.0
      %539 = vmatpush1.msra.mxu0 0.0
      %540 = vmatprep.subr.mxu0 0.0
      %541 = vmatpush1.msra.mxu0 0.0
      %542 = vmatprep.subr.mxu0 0.0
      %543 = vmatpush1.msra.mxu0 0.0
      %544 = vmatprep.subr.mxu0 0.0
      %545 = vmatpush1.msra.mxu0 0.0
      %546 = vmatprep.subr.mxu0 0.0
      %547 = vmatpush1.msra.mxu0 0.0
      %548 = vmatprep.subr.mxu0 0.0
      %549 = vmatpush1.msra.mxu0 0.0
      %550 = vmatprep.subr.mxu0 0.0
      %551 = vmatpush1.msra.mxu0 0.0
      %552 = vmatprep.subr.mxu0 0.0
      %553 = vmatpush1.msra.mxu0 0.0
      %554 = vmatprep.subr.mxu0 %v514
      %555 = vmatpush1.msra.mxu0 %v512
      %556 = vmatprep.subr.mxu0 %v454
      %557 = vmatpush1.msra.mxu0 %v453
      %558 = vmatprep.subr.mxu0 %v444
      %559 = vmatpush1.msra.mxu0 %v443
      %560 = vmatprep.subr.mxu0 %v434
      %561 = vmatpush1.msra.mxu0 %v433
      %562 = vmatprep.subr.mxu0 %v424
      %563 = vmatpush1.msra.mxu0 %v423
      %564 = vmatprep.subr.mxu0 0.0
      %565 = vmatpush2.msra.mxu0 0.0
      %566 = vmatprep.subr.mxu0 0.0
      %567 = vmatpush2.msra.mxu0 0.0
      %568 = vmatprep.subr.mxu0 0.0
      %569 = vmatpush2.msra.mxu0 0.0
      %570 = vmatprep.subr.mxu0 0.0
      %571 = vmatpush2.msra.mxu0 0.0
      %572 = vmatprep.subr.mxu0 0.0
      %573 = vmatpush2.msra.mxu0 0.0
      %574 = vmatprep.subr.mxu0 0.0
      %575 = vmatpush2.msra.mxu0 0.0
      %576 = vmatprep.subr.mxu0 0.0
      %577 = vmatpush2.msra.mxu0 0.0
      %578 = vmatprep.subr.mxu0 0.0
      %579 = vmatpush2.msra.mxu0 0.0
      %580 = vmatprep.subr.mxu0 0.0
      %581 = vmatpush2.msra.mxu0 0.0
      %582 = vmatprep.subr.mxu0 0.0
      %583 = vmatpush2.msra.mxu0 0.0
      %584 = vmatprep.subr.mxu0 0.0
      %585 = vmatpush2.msra.mxu0 0.0
      %586 = vmatprep.subr.mxu0 0.0
      %587 = vmatpush2.msra.mxu0 0.0
      %588 = vmatprep.subr.mxu0 0.0
      %589 = vmatpush2.msra.mxu0 0.0
      %590 = vmatprep.subr.mxu0 0.0
      %591 = vmatpush2.msra.mxu0 0.0
      %592 = vmatprep.subr.mxu0 0.0
      %593 = vmatpush2.msra.mxu0 0.0
      %594 = vmatprep.subr.mxu0 0.0
      %595 = vmatpush2.msra.mxu0 0.0
      %596 = vmatprep.mubr.f32.mxu0 0.0
      %597 = vmatmul.mubr.f32.gmra.mxu0 %v510
      %v598 = vpop.f32.mrf.mxu0
      %v599 = vadd.f32 %v421, %v598
      %v600 = vpop.f32.mrf.mxu0
      %v601 = vadd.f32 %v421, %v600
      %602 = vdwg.mxu0
      %603 = vmatprep.subr.mxu0 0.0
      %604 = vmatpush1.msra.mxu0 0.0
      %605 = vmatprep.subr.mxu0 0.0
      %606 = vmatpush1.msra.mxu0 0.0
      %607 = vmatprep.subr.mxu0 0.0
      %608 = vmatpush1.msra.mxu0 0.0
      %609 = vmatprep.subr.mxu0 0.0
      %610 = vmatpush1.msra.mxu0 0.0
      %611 = vmatprep.subr.mxu0 0.0
      %612 = vmatpush1.msra.mxu0 0.0
      %613 = vmatprep.subr.mxu0 0.0
      %614 = vmatpush1.msra.mxu0 0.0
      %615 = vmatprep.subr.mxu0 0.0
      %616 = vmatpush1.msra.mxu0 0.0
      %617 = vmatprep.subr.mxu0 0.0
      %618 = vmatpush1.msra.mxu0 0.0
      %619 = vmatprep.subr.mxu0 0.0
      %620 = vmatpush1.msra.mxu0 0.0
      %621 = vmatprep.subr.mxu0 0.0
      %622 = vmatpush1.msra.mxu0 0.0
      %623 = vmatprep.subr.mxu0 0.0
      %624 = vmatpush1.msra.mxu0 0.0
      %625 = vmatprep.subr.mxu0 %v518
      %626 = vmatpush1.msra.mxu0 %v516
      %627 = vmatprep.subr.mxu0 %v456
      %628 = vmatpush1.msra.mxu0 %v455
      %629 = vmatprep.subr.mxu0 %v446
      %630 = vmatpush1.msra.mxu0 %v445
      %631 = vmatprep.subr.mxu0 %v436
      %632 = vmatpush1.msra.mxu0 %v435
      %633 = vmatprep.subr.mxu0 %v426
      %634 = vmatpush1.msra.mxu0 %v425
      %635 = vmatprep.subr.mxu0 0.0
      %636 = vmatpush2.msra.mxu0 0.0
      %637 = vmatprep.subr.mxu0 0.0
      %638 = vmatpush2.msra.mxu0 0.0
      %639 = vmatprep.subr.mxu0 0.0
      %640 = vmatpush2.msra.mxu0 0.0
      %641 = vmatprep.subr.mxu0 0.0
      %642 = vmatpush2.msra.mxu0 0.0
      %643 = vmatprep.subr.mxu0 0.0
      %644 = vmatpush2.msra.mxu0 0.0
      %645 = vmatprep.subr.mxu0 0.0
      %646 = vmatpush2.msra.mxu0 0.0
      %647 = vmatprep.subr.mxu0 0.0
      %648 = vmatpush2.msra.mxu0 0.0
      %649 = vmatprep.subr.mxu0 0.0
      %650 = vmatpush2.msra.mxu0 0.0
      %651 = vmatprep.subr.mxu0 0.0
      %652 = vmatpush2.msra.mxu0 0.0
      %653 = vmatprep.subr.mxu0 0.0
      %654 = vmatpush2.msra.mxu0 0.0
      %655 = vmatprep.subr.mxu0 0.0
      %656 = vmatpush2.msra.mxu0 0.0
      %657 = vmatprep.subr.mxu0 0.0
      %658 = vmatpush2.msra.mxu0 0.0
      %659 = vmatprep.subr.mxu0 0.0
      %660 = vmatpush2.msra.mxu0 0.0
      %661 = vmatprep.subr.mxu0 0.0
      %662 = vmatpush2.msra.mxu0 0.0
      %663 = vmatprep.subr.mxu0 0.0
      %664 = vmatpush2.msra.mxu0 0.0
      %665 = vmatprep.subr.mxu0 0.0
      %666 = vmatpush2.msra.mxu0 0.0
      %667 = vmatprep.mubr.f32.mxu0 0.0
      %668 = vmatmul.mubr.f32.gmra.mxu0 %v510
      %v669 = vpop.f32.mrf.mxu0
      %v670 = vadd.f32 %v421, %v669
      %v671 = vpop.f32.mrf.mxu0
      %v672 = vadd.f32 %v421, %v671
      %673 = vdwg.mxu0
      %674 = vmatprep.subr.mxu0 0.0
      %675 = vmatpush1.msra.mxu0 0.0
      %676 = vmatprep.subr.mxu0 0.0
      %677 = vmatpush1.msra.mxu0 0.0
      %678 = vmatprep.subr.mxu0 0.0
      %679 = vmatpush1.msra.mxu0 0.0
      %680 = vmatprep.subr.mxu0 0.0
      %681 = vmatpush1.msra.mxu0 0.0
      %682 = vmatprep.subr.mxu0 0.0
      %683 = vmatpush1.msra.mxu0 0.0
      %684 = vmatprep.subr.mxu0 0.0
      %685 = vmatpush1.msra.mxu0 0.0
      %686 = vmatprep.subr.mxu0 0.0
      %687 = vmatpush1.msra.mxu0 0.0
      %688 = vmatprep.subr.mxu0 0.0
      %689 = vmatpush1.msra.mxu0 0.0
      %690 = vmatprep.subr.mxu0 0.0
      %691 = vmatpush1.msra.mxu0 0.0
      %692 = vmatprep.subr.mxu0 0.0
      %693 = vmatpush1.msra.mxu0 0.0
      %694 = vmatprep.subr.mxu0 0.0
      %695 = vmatpush1.msra.mxu0 0.0
      %696 = vmatprep.subr.mxu0 %v522
      %697 = vmatpush1.msra.mxu0 %v520
      %698 = vmatprep.subr.mxu0 %v458
      %699 = vmatpush1.msra.mxu0 %v457
      %700 = vmatprep.subr.mxu0 %v448
      %701 = vmatpush1.msra.mxu0 %v447
      %702 = vmatprep.subr.mxu0 %v438
      %703 = vmatpush1.msra.mxu0 %v437
      %704 = vmatprep.subr.mxu0 %v428
      %705 = vmatpush1.msra.mxu0 %v427
      %706 = vmatprep.subr.mxu0 0.0
      %707 = vmatpush2.msra.mxu0 0.0
      %708 = vmatprep.subr.mxu0 0.0
      %709 = vmatpush2.msra.mxu0 0.0
      %710 = vmatprep.subr.mxu0 0.0
      %711 = vmatpush2.msra.mxu0 0.0
      %712 = vmatprep.subr.mxu0 0.0
      %713 = vmatpush2.msra.mxu0 0.0
      %714 = vmatprep.subr.mxu0 0.0
      %715 = vmatpush2.msra.mxu0 0.0
      %716 = vmatprep.subr.mxu0 0.0
      %717 = vmatpush2.msra.mxu0 0.0
      %718 = vmatprep.subr.mxu0 0.0
      %719 = vmatpush2.msra.mxu0 0.0
      %720 = vmatprep.subr.mxu0 0.0
      %721 = vmatpush2.msra.mxu0 0.0
      %722 = vmatprep.subr.mxu0 0.0
      %723 = vmatpush2.msra.mxu0 0.0
      %724 = vmatprep.subr.mxu0 0.0
      %725 = vmatpush2.msra.mxu0 0.0
      %726 = vmatprep.subr.mxu0 0.0
      %727 = vmatpush2.msra.mxu0 0.0
      %728 = vmatprep.subr.mxu0 0.0
      %729 = vmatpush2.msra.mxu0 0.0
      %730 = vmatprep.subr.mxu0 0.0
      %731 = vmatpush2.msra.mxu0 0.0
      %732 = vmatprep.subr.mxu0 0.0
      %733 = vmatpush2.msra.mxu0 0.0
      %734 = vmatprep.subr.mxu0 0.0
      %735 = vmatpush2.msra.mxu0 0.0
      %736 = vmatprep.subr.mxu0 0.0
      %737 = vmatpush2.msra.mxu0 0.0
      %738 = vmatprep.mubr.f32.mxu0 0.0
      %739 = vmatmul.mubr.f32.gmra.mxu0 %v510
      %v740 = vpop.f32.mrf.mxu0
      %v741 = vadd.f32 %v421, %v740
      %v742 = vpop.f32.mrf.mxu0
      %v743 = vadd.f32 %v421, %v742
      %744 = vdwg.mxu0
      %745 = vmatprep.subr.mxu0 0.0
      %746 = vmatpush1.msra.mxu0 0.0
      %747 = vmatprep.subr.mxu0 0.0
      %748 = vmatpush1.msra.mxu0 0.0
      %749 = vmatprep.subr.mxu0 0.0
      %750 = vmatpush1.msra.mxu0 0.0
      %751 = vmatprep.subr.mxu0 0.0
      %752 = vmatpush1.msra.mxu0 0.0
      %753 = vmatprep.subr.mxu0 0.0
      %754 = vmatpush1.msra.mxu0 0.0
      %755 = vmatprep.subr.mxu0 0.0
      %756 = vmatpush1.msra.mxu0 0.0
      %757 = vmatprep.subr.mxu0 0.0
      %758 = vmatpush1.msra.mxu0 0.0
      %759 = vmatprep.subr.mxu0 0.0
      %760 = vmatpush1.msra.mxu0 0.0
      %761 = vmatprep.subr.mxu0 0.0
      %762 = vmatpush1.msra.mxu0 0.0
      %763 = vmatprep.subr.mxu0 0.0
      %764 = vmatpush1.msra.mxu0 0.0
      %765 = vmatprep.subr.mxu0 0.0
      %766 = vmatpush1.msra.mxu0 0.0
      %767 = vmatprep.subr.mxu0 %v526
      %768 = vmatpush1.msra.mxu0 %v524
      %769 = vmatprep.subr.mxu0 %v460
      %770 = vmatpush1.msra.mxu0 %v459
      %771 = vmatprep.subr.mxu0 %v450
      %772 = vmatpush1.msra.mxu0 %v449
      %773 = vmatprep.subr.mxu0 %v440
      %774 = vmatpush1.msra.mxu0 %v439
      %775 = vmatprep.subr.mxu0 %v430
      %776 = vmatpush1.msra.mxu0 %v429
      %777 = vmatprep.subr.mxu0 0.0
      %778 = vmatpush2.msra.mxu0 0.0
      %779 = vmatprep.subr.mxu0 0.0
      %780 = vmatpush2.msra.mxu0 0.0
      %781 = vmatprep.subr.mxu0 0.0
      %782 = vmatpush2.msra.mxu0 0.0
      %783 = vmatprep.subr.mxu0 0.0
      %784 = vmatpush2.msra.mxu0 0.0
      %785 = vmatprep.subr.mxu0 0.0
      %786 = vmatpush2.msra.mxu0 0.0
      %787 = vmatprep.subr.mxu0 0.0
      %788 = vmatpush2.msra.mxu0 0.0
      %789 = vmatprep.subr.mxu0 0.0
      %790 = vmatpush2.msra.mxu0 0.0
      %791 = vmatprep.subr.mxu0 0.0
      %792 = vmatpush2.msra.mxu0 0.0
      %793 = vmatprep.subr.mxu0 0.0
      %794 = vmatpush2.msra.mxu0 0.0
      %795 = vmatprep.subr.mxu0 0.0
      %796 = vmatpush2.msra.mxu0 0.0
      %797 = vmatprep.subr.mxu0 0.0
      %798 = vmatpush2.msra.mxu0 0.0
      %799 = vmatprep.subr.mxu0 0.0
      %800 = vmatpush2.msra.mxu0 0.0
      %801 = vmatprep.subr.mxu0 0.0
      %802 = vmatpush2.msra.mxu0 0.0
      %803 = vmatprep.subr.mxu0 0.0
      %804 = vmatpush2.msra.mxu0 0.0
      %805 = vmatprep.subr.mxu0 0.0
      %806 = vmatpush2.msra.mxu0 0.0
      %807 = vmatprep.subr.mxu0 0.0
      %808 = vmatpush2.msra.mxu0 0.0
      %809 = vmatprep.mubr.f32.mxu0 0.0
      %810 = vmatmul.mubr.f32.gmra.mxu0 %v510
      %v811 = vpop.f32.mrf.mxu0
      %v812 = vadd.f32 %v421, %v811
      %v813 = vpop.f32.mrf.mxu0
      %v814 = vadd.f32 %v421, %v813
      %815 = vdwg.mxu0
      %816 = vmatprep.subr.mxu0 0.0
      %817 = vmatpush1.msra.mxu0 0.0
      %818 = vmatprep.subr.mxu0 0.0
      %819 = vmatpush1.msra.mxu0 0.0
      %820 = vmatprep.subr.mxu0 0.0
      %821 = vmatpush1.msra.mxu0 0.0
      %822 = vmatprep.subr.mxu0 0.0
      %823 = vmatpush1.msra.mxu0 0.0
      %824 = vmatprep.subr.mxu0 0.0
      %825 = vmatpush1.msra.mxu0 0.0
      %826 = vmatprep.subr.mxu0 0.0
      %827 = vmatpush1.msra.mxu0 0.0
      %828 = vmatprep.subr.mxu0 0.0
      %829 = vmatpush1.msra.mxu0 0.0
      %830 = vmatprep.subr.mxu0 0.0
      %831 = vmatpush1.msra.mxu0 0.0
      %832 = vmatprep.subr.mxu0 0.0
      %833 = vmatpush1.msra.mxu0 0.0
      %834 = vmatprep.subr.mxu0 0.0
      %835 = vmatpush1.msra.mxu0 0.0
      %836 = vmatprep.subr.mxu0 0.0
      %837 = vmatpush1.msra.mxu0 0.0
      %838 = vmatprep.subr.mxu0 %v530
      %839 = vmatpush1.msra.mxu0 %v528
      %840 = vmatprep.subr.mxu0 %v462
      %841 = vmatpush1.msra.mxu0 %v461
      %842 = vmatprep.subr.mxu0 %v452
      %843 = vmatpush1.msra.mxu0 %v451
      %844 = vmatprep.subr.mxu0 %v442
      %845 = vmatpush1.msra.mxu0 %v441
      %846 = vmatprep.subr.mxu0 %v432
      %847 = vmatpush1.msra.mxu0 %v431
      %848 = vmatprep.subr.mxu0 0.0
      %849 = vmatpush2.msra.mxu0 0.0
      %850 = vmatprep.subr.mxu0 0.0
      %851 = vmatpush2.msra.mxu0 0.0
      %852 = vmatprep.subr.mxu0 0.0
      %853 = vmatpush2.msra.mxu0 0.0
      %854 = vmatprep.subr.mxu0 0.0
      %855 = vmatpush2.msra.mxu0 0.0
      %856 = vmatprep.subr.mxu0 0.0
      %857 = vmatpush2.msra.mxu0 0.0
      %858 = vmatprep.subr.mxu0 0.0
      %859 = vmatpush2.msra.mxu0 0.0
      %860 = vmatprep.subr.mxu0 0.0
      %861 = vmatpush2.msra.mxu0 0.0
      %862 = vmatprep.subr.mxu0 0.0
      %863 = vmatpush2.msra.mxu0 0.0
      %864 = vmatprep.subr.mxu0 0.0
      %865 = vmatpush2.msra.mxu0 0.0
      %866 = vmatprep.subr.mxu0 0.0
      %867 = vmatpush2.msra.mxu0 0.0
      %868 = vmatprep.subr.mxu0 0.0
      %869 = vmatpush2.msra.mxu0 0.0
      %870 = vmatprep.subr.mxu0 0.0
      %871 = vmatpush2.msra.mxu0 0.0
      %872 = vmatprep.subr.mxu0 0.0
      %873 = vmatpush2.msra.mxu0 0.0
      %874 = vmatprep.subr.mxu0 0.0
      %875 = vmatpush2.msra.mxu0 0.0
      %876 = vmatprep.subr.mxu0 0.0
      %877 = vmatpush2.msra.mxu0 0.0
      %878 = vmatprep.subr.mxu0 0.0
      %879 = vmatpush2.msra.mxu0 0.0
      %880 = vmatprep.mubr.f32.mxu0 0.0
      %881 = vmatmul.mubr.f32.gmra.mxu0 %v510
      %v882 = vpop.f32.mrf.mxu0
      %v883 = vadd.f32 %v421, %v882
      %v884 = vpop.f32.mrf.mxu0
      %v885 = vadd.f32 %v421, %v884
      %886 = vdwg.mxu0
      %887 = vst [vmem:[%s170] sm:$0xff] %v599
      %888 = vst [vmem:[%s170 + $0x8] sm:$0xff] %v601
      %889 = vst [vmem:[%s170 + $0x10] sm:$0xff] %v670
      %890 = vst [vmem:[%s170 + $0x18] sm:$0xff] %v672
      %891 = vst [vmem:[%s170 + $0x20] sm:$0xff] %v741
      %892 = vst [vmem:[%s170 + $0x28] sm:$0xff] %v743
      %893 = vst [vmem:[%s170 + $0x30] sm:$0xff] %v812
      %894 = vst [vmem:[%s170 + $0x38] sm:$0xff] %v814
      %895 = vst [vmem:[%s170 + $0x40] sm:$0xff] %v883
      %896 = vst [vmem:[%s170 + $0x48] sm:$0xff] %v885
      %p897 = scmp.lt.s32.totalorder %s14, 1
      %s898 = scalar_select %p897, %s14, 1
      %s899 = smul.addr %s898, 10
      %s900 = smul.addr %s899, 8
      %s901 = scalar_lea.vmem %s3, %s900
      // Predicated region
      $region33: #{resize_conv_layer.1} parent=31 // pred_check
        %p902 = pneg %p100
      $region34: #{resize_conv_layer.1} parent=31 // pred_check_branch
        %904 = sbr.rel (%p902) target = $region36
      $region35: #{resize_conv_layer.1} parent=31 // pred_region
        _
      $region36: #{resize_conv_layer.1} parent=31 // pred_fallthru
        _
    $region32: #{resize_conv_layer.1} parent=5 // pred_fallthru
      _
    %p905 = scmp.le.s32.totalorder 2, %s9
    // Predicated region
    $region37: #{resize_conv_layer.1} parent=5 // pred_check
      %p906 = pneg %p905
    $region38: #{resize_conv_layer.1} parent=5 // pred_check_branch
      %908 = sbr.rel (%p906) target = $region40
    $region39: #{resize_conv_layer.1} parent=5 // pred_region
      %s909 = ssub.s32 %s9, 2
      // Predicated region
      $region41: #{resize_conv_layer.1} parent=39 // pred_check
        %p910 = pneg %p106
      $region42: #{resize_conv_layer.1} parent=39 // pred_check_branch
        %912 = sbr.rel (%p910) target = $region44
      $region43: #{resize_conv_layer.1} parent=39 // pred_region
        %p913 = scmp.lt.s32.totalorder %s15, 1
        %s914 = scalar_select %p913, %s15, 1
        %s915 = smul.addr %s914, 10
        %s916 = smul.addr %s915, 8
        %s917 = scalar_lea.vmem %s3, %s916
      $region44: #{resize_conv_layer.1} parent=39 // pred_fallthru
        _
    $region40: #{resize_conv_layer.1} parent=5 // pred_fallthru
      _
  $region6: #{resize_conv_layer.1} parent=0 // loop_footer
    %s13 = sadd.s32 1, %s9
  $region7: #{resize_conv_layer.1} parent=0 // loop_footer_branch
    %8 = sbr.rel target = $region3
  $region8: #{resize_conv_layer.1} parent=0 // loop_exit
    _

</llo_original>
